<compile_context>
chip_gen: v6e
topology: v6e:2x2x1
jax: 0.10.0
libtpu: 0.0.40
codegen_flags: <defaults>
</compile_context>

<pallas_src>
import jax
import jax.numpy as jnp
from jax.experimental import pallas as pl
from jax.experimental.pallas import tpu as pltpu


def _pick_row_tile(d_pad: int, itemsize: int, budget_bytes: int = 8 << 20) -> int:
    """Largest multiple-of-128 divisor of d_pad whose (tile_r, d_pad) W tile fits the
    per-buffer byte budget.  Big tiles (>= ~2 MiB) keep the per-grid-step overhead
    negligible; the budget keeps double/triple buffering inside every generation's
    VMEM.  (For truly enormous D a column grid axis would be the next step.)"""
    max_rows = max(128, budget_bytes // (d_pad * itemsize))
    best = 128
    for mult in range(1, d_pad // 128 + 1):
        t = 128 * mult
        if t > max_rows:
            break
        if d_pad % t == 0:
            best = t
    return best


def _w_block_spec(tile_r: int, d_pad: int, n_tiles_per_split: int, buffer_count: int):
    idx = lambda s, r: (s * n_tiles_per_split + r, 0)
    if buffer_count > 2 and hasattr(pl, "Buffered"):
        try:
            return pl.BlockSpec((tile_r, d_pad), idx,
                                pipeline_mode=pl.Buffered(buffer_count))
        except TypeError:  # older BlockSpec without pipeline_mode: fall back to 2 bufs
            pass
    return pl.BlockSpec((tile_r, d_pad), idx)


def _make_kernel(tile_r: int, n_tiles_per_split: int):
    def kernel(zu_ref, w_ref, zv_ref, o_ref):
        # zu_ref: (B, Dp) resident, w_ref: (tile_r, Dp) streamed W row tile,
        # zv_ref: (B, Dp) resident, o_ref: (1, B, 1) resident per-split accumulator.
        r = pl.program_id(1)

        @pl.when(r == 0)
        def _init():
            o_ref[...] = jnp.zeros_like(o_ref)

        # Cast the small resident zu to the streamed weight dtype (bf16 -> native MXU
        # path); MXU accumulates in f32.
        zu = zu_ref[...].astype(w_ref.dtype)            # (B, Dp)
        w = w_ref[...]                                  # (tile_r, Dp)

        # inter[b, j] = sum_k zu[b, k] * W[j, k]  == (zu @ W_tile.T), f32 accumulation.
        inter = jax.lax.dot_general(
            zu, w,
            dimension_numbers=(((1,), (1,)), ((), ())),
            preferred_element_type=jnp.float32,
        )                                               # (B, tile_r)

        # zv slice matching this tile's rows, taken from the resident (B, Dp) zv.
        tile_idx = pl.program_id(0) * n_tiles_per_split + r
        start = pl.multiple_of(tile_idx * tile_r, 128)
        zv_t = zv_ref[:, pl.ds(start, tile_r)].astype(jnp.float32)   # (B, tile_r)

        # Bilinear-form partial: VPU multiply + one cross-lane reduce per tile.
        o_ref[...] += jnp.sum(inter * zv_t, axis=-1, keepdims=True)[None]

    return kernel


def bilinear_decoder_batched(zu, zv, weight, *, row_tile=None, num_row_splits=None,
                             w_buffer_count=2):
    """sigmoid(zu[b] @ W.T @ zv[b]) for a batch of pairs; returns (B, 1) float32.

    weight: (D, D) PyTorch-Linear-layout weight (out_features, in_features), streamed
            in its stored dtype (bf16 recommended) -- no wrapper-side cast of the big
            operand.
    w_buffer_count: W-stream pipeline depth (2 = default double buffering; 3 is an
            optional knob to sweep when VMEM headroom allows).
    """
    d = weight.shape[0]
    assert weight.shape == (d, d), weight.shape
    zu = jnp.asarray(zu).reshape(-1, d)
    zv = jnp.asarray(zv).reshape(-1, d)
    b = zu.shape[0]
    assert zv.shape[0] == b, (zu.shape, zv.shape)

    # Pad D up to a multiple of 128 lanes; zero padding is exact for this bilinear form.
    d_pad = ((d + 127) // 128) * 128
    if d_pad != d:
        # TODO(synk): for large non-128-multiple D, store W pre-padded to avoid this copy.
        weight = jnp.pad(weight, ((0, d_pad - d), (0, d_pad - d)))
        zu = jnp.pad(zu, ((0, 0), (0, d_pad - d)))
        zv = jnp.pad(zv, ((0, 0), (0, d_pad - d)))

    w_item = jnp.dtype(weight.dtype).itemsize
    tile_r = row_tile if row_tile is not None else _pick_row_tile(d_pad, w_item)
    assert d_pad % tile_r == 0 and tile_r % 128 == 0, (d_pad, tile_r)
    n_tiles = d_pad // tile_r

    if num_row_splits is None:
        # Split W rows across two TensorCores (v7x) when there are tiles to share;
        # harmless on single-TC v5e/v6e (the axis is just iterated).
        num_row_splits = 2 if (n_tiles >= 2 and n_tiles % 2 == 0) else 1
    assert n_tiles % num_row_splits == 0, (n_tiles, num_row_splits)
    n_tiles_per_split = n_tiles // num_row_splits

    # Explicit VMEM budget: W stream buffers + resident zu/zv (count 2x to be safe)
    # + tiny accumulators.  Capped below v7x's 64 MiB physical VMEM.
    tile_bytes = tile_r * d_pad * w_item
    resident_bytes = 2 * b * d_pad * (zu.dtype.itemsize + zv.dtype.itemsize)
    needed = w_buffer_count * tile_bytes + resident_bytes + 2 * num_row_splits * b * 4
    vmem_limit = int(min(60 << 20, max(needed * 5 // 4 + (2 << 20), 16 << 20)))

    cost = pl.CostEstimate(
        flops=2 * b * d_pad * d_pad + 2 * b * d_pad,
        transcendentals=0,
        bytes_accessed=d_pad * d_pad * w_item + resident_bytes // 2
        + num_row_splits * b * 4,
    )

    partials = pl.pallas_call(
        _make_kernel(tile_r, n_tiles_per_split),
        out_shape=jax.ShapeDtypeStruct((num_row_splits, b, 1), jnp.float32),
        grid_spec=pltpu.PrefetchScalarGridSpec(
            num_scalar_prefetch=0,
            grid=(num_row_splits, n_tiles_per_split),
            in_specs=[
                pl.BlockSpec((b, d_pad), lambda s, r: (0, 0)),           # zu (resident)
                _w_block_spec(tile_r, d_pad, n_tiles_per_split,
                              w_buffer_count),                           # W tile (streamed)
                pl.BlockSpec((b, d_pad), lambda s, r: (0, 0)),           # zv (resident)
            ],
            out_specs=pl.BlockSpec((1, b, 1), lambda s, r: (s, 0, 0)),   # per-split acc
        ),
        compiler_params=pltpu.CompilerParams(
            dimension_semantics=("parallel", "arbitrary"),
            vmem_limit_bytes=vmem_limit,
        ),
        cost_estimate=cost,
    )(zu, weight, zv)                                                    # (splits, B, 1)

    # Tiny O(B) epilogue: combine per-core partial sums and apply the sigmoid.
    return jax.nn.sigmoid(jnp.sum(partials, axis=0))                     # (B, 1)


def bilinear_decoder(zu, zg, zv, weight, **kwargs):
    """Module-faithful BilinearDecoder.forward: returns (1, 1) float32."""
    del zg  # reshaped but never used in the reference PyTorch module
    d = weight.shape[0]
    out = bilinear_decoder_batched(jnp.reshape(zu, (1, d)), jnp.reshape(zv, (1, d)),
                                   weight, **kwargs)
    return out.reshape(1, 1)


def _reference(zu, zv, weight):
    # Mirrors the kernel's mixed precision: bf16-rounded W / zu, f32 products + accumulation.
    d = weight.shape[0]
    w32 = weight.astype(jnp.float32)
    zu32 = jnp.asarray(zu).reshape(-1, d).astype(weight.dtype).astype(jnp.float32)
    zv32 = jnp.asarray(zv).reshape(-1, d).astype(jnp.float32)
    inter = zu32 @ w32.T                                                 # (B, D)
    return jax.nn.sigmoid(jnp.sum(inter * zv32, axis=-1, keepdims=True))  # (B, 1)


if __name__ == "__main__":
    D = 128   # input_size of the reference module
    B = 8     # batched pairs for the amortized path

    key = jax.random.PRNGKey(0)
    (k_w, k_zu, k_zg, k_zv, k_bu, k_bv, k_w2, k_bu2, k_bv2) = jax.random.split(key, 9)

    # nn.Linear-shaped weight (D, D); stored once in bf16 (halved HBM stream,
    # native MXU dtype, f32 accumulation in-kernel).
    bound = 1.0 / jnp.sqrt(jnp.float32(D))
    weight_bf16 = jax.random.uniform(
        k_w, (D, D), jnp.float32, -bound, bound).astype(jnp.bfloat16)

    zu = jax.random.normal(k_zu, (D,), jnp.float32)
    zg = jax.random.normal(k_zg, (D,), jnp.float32)   # unused, as in the PyTorch module
    zv = jax.random.normal(k_zv, (D,), jnp.float32)

    # 1) Module-faithful forward: single (zu, zg, zv) triple -> (1, 1).
    out = jax.block_until_ready(bilinear_decoder(zu, zg, zv, weight_bf16))
    ref = _reference(zu, zv, weight_bf16)
    assert out.shape == (1, 1), out.shape
    assert jnp.allclose(out, ref, atol=1e-4, rtol=1e-4), (out, ref)

    # 2) Batched pairs: one D^2 weight stream amortized over B outputs.
    zu_b = jax.random.normal(k_bu, (B, D), jnp.float32)
    zv_b = jax.random.normal(k_bv, (B, D), jnp.float32)
    out_b = jax.block_until_ready(bilinear_decoder_batched(zu_b, zv_b, weight_bf16))
    ref_b = _reference(zu_b, zv_b, weight_bf16)
    assert out_b.shape == (B, 1), out_b.shape
    assert jnp.allclose(out_b, ref_b, atol=1e-4, rtol=1e-4), (out_b, ref_b)

    # 3) Multi-tile weight stream + 2-way "parallel" row split (v7x two-TC path).
    D2 = 256
    bound2 = 1.0 / jnp.sqrt(jnp.float32(D2))
    w2 = jax.random.uniform(
        k_w2, (D2, D2), jnp.float32, -bound2, bound2).astype(jnp.bfloat16)
    zu2 = jax.random.normal(k_bu2, (B, D2), jnp.float32)
    zv2 = jax.random.normal(k_bv2, (B, D2), jnp.float32)
    out2 = jax.block_until_ready(
        bilinear_decoder_batched(zu2, zv2, w2, row_tile=128, num_row_splits=2))
    ref2 = _reference(zu2, zv2, w2)
    assert out2.shape == (B, 1), out2.shape
    assert jnp.allclose(out2, ref2, atol=1e-4, rtol=1e-4), (out2, ref2)

    print("KERNEL_OK")
</pallas_src>

<mosaic_0001>
module attributes {stable_mosaic.version = 11 : i64} {
  func.func @kernel(%arg0: i32, %arg1: i32, %arg2: memref<1x128xf32, #tpu.memory_space<vmem>>, %arg3: memref<128x128xbf16, #tpu.memory_space<vmem>>, %arg4: memref<1x128xf32, #tpu.memory_space<vmem>>, %arg5: memref<1x1x1xf32, #tpu.memory_space<vmem>>) attributes {dimension_semantics = [#tpu.dimension_semantics<parallel>, #tpu.dimension_semantics<arbitrary>], iteration_bounds = array<i64: 1, 1>, scalar_prefetch = 0 : i64, scratch_operands = 0 : i64, tpu.core_type = #tpu.core_type<tc>, window_params = [{pipeline_mode = #tpu.pipeline_mode<synchronous>, transform_indices = @transform_0, window_bounds = array<i64: 1, 128>}, {transform_indices = @transform_1, window_bounds = array<i64: 128, 128>}, {pipeline_mode = #tpu.pipeline_mode<synchronous>, transform_indices = @transform_2, window_bounds = array<i64: 1, 128>}, {transform_indices = @transform_3, window_bounds = array<i64: 1, 1, 1>}]} {
    %c0_i32 = arith.constant 0 : i32
    %0 = arith.cmpi eq, %arg1, %c0_i32 : i32
    %1 = arith.extui %0 : i1 to i32
    %c0_i32_0 = arith.constant 0 : i32
    %2 = arith.cmpi ne, %1, %c0_i32_0 : i32
    scf.if %2 {
      %cst_12 = arith.constant 0.000000e+00 : f32
      %20 = vector.broadcast %cst_12 : f32 to vector<1x1x1xf32>
      %c0_13 = arith.constant 0 : index
      %c0_14 = arith.constant 0 : index
      %c0_15 = arith.constant 0 : index
      %21 = vector.load %arg5[%c0_13, %c0_14, %c0_15] : memref<1x1x1xf32, #tpu.memory_space<vmem>>, vector<1x1x1xf32>
      tpu.vector_store %arg5[%c0_13, %c0_14, %c0_15], %20 {strides = array<i32>} : memref<1x1x1xf32, #tpu.memory_space<vmem>>, vector<1x1x1xf32>,
    } else {
    }
    %c0 = arith.constant 0 : index
    %c0_1 = arith.constant 0 : index
    %3 = vector.load %arg2[%c0, %c0_1] : memref<1x128xf32, #tpu.memory_space<vmem>>, vector<1x128xf32>
    %4 = arith.truncf %3 : vector<1x128xf32> to vector<1x128xbf16>
    %c0_2 = arith.constant 0 : index
    %c0_3 = arith.constant 0 : index
    %5 = vector.load %arg3[%c0_2, %c0_3] : memref<128x128xbf16, #tpu.memory_space<vmem>>, vector<128x128xbf16>
    %cst = arith.constant dense<0.000000e+00> : vector<1x128xf32>
    %6 = tpu.matmul %4, %5, %cst {dimension_numbers = #tpu.dot_dimension_numbers<[1], [1], [0], [0], [0, 0, 1, 0], [], []>} : vector<1x128xbf16>, vector<128x128xbf16>, vector<1x128xf32> -> vector<1x128xf32>
    %c1_i32 = arith.constant 1 : i32
    %7 = arith.muli %arg0, %c1_i32 : i32
    %8 = arith.addi %7, %arg1 : i32
    %c128_i32 = arith.constant 128 : i32
    %9 = arith.muli %8, %c128_i32 : i32
    %10 = tpu.assume_multiple %9, 128 : i32
    %c0_4 = arith.constant 0 : index
    %11 = arith.index_cast %10 : i32 to index
    %12 = vector.load %arg4[%c0_4, %11] : memref<1x128xf32, #tpu.memory_space<vmem>>, vector<1x128xf32>
    %c0_5 = arith.constant 0 : index
    %c0_6 = arith.constant 0 : index
    %c0_7 = arith.constant 0 : index
    %13 = vector.load %arg5[%c0_5, %c0_6, %c0_7] : memref<1x1x1xf32, #tpu.memory_space<vmem>>, vector<1x1x1xf32>
    %14 = arith.mulf %6, %12 : vector<1x128xf32>
    %cst_8 = arith.constant dense<0.000000e+00> : vector<1xf32>
    %15 = vector.multi_reduction <add>, %14, %cst_8 [1] : vector<1x128xf32> to vector<1xf32>
    %16 = vector.shape_cast %15 : vector<1xf32> to vector<1x1xf32>
    %17 = vector.shape_cast %16 : vector<1x1xf32> to vector<1x1x1xf32>
    %18 = arith.addf %13, %17 : vector<1x1x1xf32>
    %c0_9 = arith.constant 0 : index
    %c0_10 = arith.constant 0 : index
    %c0_11 = arith.constant 0 : index
    %19 = vector.load %arg5[%c0_9, %c0_10, %c0_11] : memref<1x1x1xf32, #tpu.memory_space<vmem>>, vector<1x1x1xf32>
    tpu.vector_store %arg5[%c0_9, %c0_10, %c0_11], %18 {strides = array<i32>} : memref<1x1x1xf32, #tpu.memory_space<vmem>>, vector<1x1x1xf32>,
    return
  }
  func.func @transform_0(%arg0: i32, %arg1: i32) -> (i32, i32) {
    %c0_i32 = arith.constant 0 : i32
    %c0_i32_0 = arith.constant 0 : i32
    %c0_i32_1 = arith.constant 0 : i32
    return %c0_i32, %c0_i32_0 : i32, i32
  }
  func.func @transform_1(%arg0: i32, %arg1: i32) -> (i32, i32) {
    %c1_i32 = arith.constant 1 : i32
    %0 = arith.muli %arg0, %c1_i32 : i32
    %1 = arith.addi %0, %arg1 : i32
    %c0_i32 = arith.constant 0 : i32
    %c0_i32_0 = arith.constant 0 : i32
    return %1, %c0_i32 : i32, i32
  }
  func.func @transform_2(%arg0: i32, %arg1: i32) -> (i32, i32) {
    %c0_i32 = arith.constant 0 : i32
    %c0_i32_0 = arith.constant 0 : i32
    %c0_i32_1 = arith.constant 0 : i32
    return %c0_i32, %c0_i32_0 : i32, i32
  }
  func.func @transform_3(%arg0: i32, %arg1: i32) -> (i32, i32, i32) {
    %c0_i32 = arith.constant 0 : i32
    %c0_i32_0 = arith.constant 0 : i32
    %c0_i32_1 = arith.constant 0 : i32
    return %arg0, %c0_i32, %c0_i32_0 : i32, i32, i32
  }
}

</mosaic_0001>

<llo_original>
// kernel: tpu_custom_call.1
$region0: #{tpu_custom_call.1}
  #allocation0 [shape = 'u32[]', space=smem, size = 0x4, offset = 0x4, fixed_abs, tag = 'smem constant byte address 0x4 - core index']
  #allocation1 [shape = 'u32[144,128]{1,0:T(1,128)}', space=vmem, size = 0x12000, scoped, tag = 'internal scratch']
  %s0 = inlined_call_operand.hbm [shape: f32[1,128], index: 0, kind: input, shape index: {}]
  %s1 = inlined_call_operand.hbm [shape: bf16[128,128], index: 1, kind: input, shape index: {}]
  %s2 = inlined_call_operand.vmem [shape: f32[1,128], index: 2, kind: input, shape index: {}]
  %s3 = inlined_call_operand.hbm [shape: f32[1,1,1], index: 3, kind: output, shape index: {}]
  %s4 = sld [smem:[#allocation0]]
  $region34: #{tpu_custom_call.1} parent=0
    _
  %s6 = ssub.s32 1, %s4
  %s7 = scalar_select 0, %s6, %s4
  $region1: #{tpu_custom_call.1} parent=0
    #allocation2 [shape = 'u8[512]{0}', space=vmem, size = 0x400, scoped, tag = 'input window, operand 0, single buffered']
    #allocation3 [shape = 's32[1]{0}', space=sflag, size = 0x4, scoped, tag = 'scoped memory for tpu_custom_call.1']
    #allocation4 [shape = 's32[1]{0}', space=sflag, size = 0x4, scoped, tag = 'scoped memory for tpu_custom_call.1']
    #allocation5 [shape = 'u8[32768]{0}', space=vmem, size = 0x8000, scoped, tag = 'input window, operand 1, single buffered']
    #allocation6 [shape = 's32[1]{0}', space=sflag, size = 0x4, scoped, tag = 'scoped memory for tpu_custom_call.1']
    #allocation7 [shape = 'u8[512]{0}', space=vmem, size = 0x400, scoped, tag = 'output window, operand 0, single buffered']
    %8 = vsyncpa [#allocation3], 0
    %9 = vsyncpa [#allocation6], 0
    %10 = vsyncpa [#allocation4], 0
    // Predicated region
    $region2: #{tpu_custom_call.1} parent=1 // pred_check
      _
    $region3: #{tpu_custom_call.1} parent=1 // pred_check_branch
      %12 = sbr.rel (0) target = $region5
    $region4: #{tpu_custom_call.1} parent=1 // pred_region
      %s14 = ssub.s32 16, 16
      %15 = vsyncadd [#allocation3], %s14
      %s17 = sshll.u32 [#allocation2], 4
      %s18 = int_to_ptr.vmem [resolvable:$true] %s17
      %20 = dma.hbm_to_vmem [thread:$0]  %s0, 16, %s18, [#allocation3]
    $region5: #{tpu_custom_call.1} parent=1 // pred_fallthru
      _
    // Predicated region
    $region6: #{tpu_custom_call.1} parent=1 // pred_check
      _
    $region7: #{tpu_custom_call.1} parent=1 // pred_check_branch
      %22 = sbr.rel (0) target = $region9
    $region8: #{tpu_custom_call.1} parent=1 // pred_region
      %s23 = sadd.s32 0, 0
      %s24 = smul.u32 16, %s23
      %s26 = ssub.s32 1024, 1024
      %27 = vsyncadd [#allocation6], %s26
      %s28 = smul.addr %s24, 64
      %s29 = scalar_lea.hbm %s1, %s28
      %s30 = sshll.u32 [#allocation5], 4
      %s31 = int_to_ptr.vmem [resolvable:$true] %s30
      %36 = dma.hbm_to_vmem [thread:$0]  %s29, 1024, %s31, [#allocation6], 64, 64, 4
    $region9: #{tpu_custom_call.1} parent=1 // pred_fallthru
      _
    // Predicated region
    $region10: #{tpu_custom_call.1} parent=1 // pred_check
      _
    $region11: #{tpu_custom_call.1} parent=1 // pred_check_branch
      %38 = sbr.rel (0) target = $region13
    $region12: #{tpu_custom_call.1} parent=1 // pred_region
      _
    $region13: #{tpu_custom_call.1} parent=1 // pred_fallthru
      _
    // Predicated region
    $region14: #{tpu_custom_call.1} parent=1 // pred_check
      _
    $region15: #{tpu_custom_call.1} parent=1 // pred_check_branch
      %40 = sbr.rel (0) target = $region17
    $region16: #{tpu_custom_call.1} parent=1 // pred_region
      %41 = dma.done [#allocation3], 16
    $region17: #{tpu_custom_call.1} parent=1 // pred_fallthru
      _
    // Predicated region
    $region18: #{tpu_custom_call.1} parent=1 // pred_check
      _
    $region19: #{tpu_custom_call.1} parent=1 // pred_check_branch
      %43 = sbr.rel (0) target = $region21
    $region20: #{tpu_custom_call.1} parent=1 // pred_region
      %44 = dma.done [#allocation6], 1024
    $region21: #{tpu_custom_call.1} parent=1 // pred_fallthru
      _
    %s45 = sadd.s32 0, 0
    %s46 = smul.u32 16, %s45
    %p48 = scmp.eq.s32.totalorder 0, 0
    // Predicated region
    $region22: #{tpu_custom_call.1} parent=1 // pred_check
      %p49 = pneg %p48
    $region23: #{tpu_custom_call.1} parent=1 // pred_check_branch
      %51 = sbr.rel (%p49) target = $region25
    $region24: #{tpu_custom_call.1} parent=1 // pred_region
      %vm52 = vcmask 0
      %53 = vst.msk [vmem:[#allocation7] sm:$0x1] %vm52, 0.0
    $region25: #{tpu_custom_call.1} parent=1 // pred_fallthru
      _
    %v54 = vld [vmem:[#allocation2] sm:$0x1]
    %v55 = vpack.c.bf16 %v54, %v54
    %v56 = vld [vmem:[#allocation5] sm:$0xf]
    %v57 = vld [vmem:[#allocation5 + $0x4] sm:$0xf]
    %v58 = vld [vmem:[#allocation5 + $0x8] sm:$0xf]
    %v59 = vld [vmem:[#allocation5 + $0xc] sm:$0xf]
    %v60 = vld [vmem:[#allocation5 + $0x10] sm:$0xf]
    %v61 = vld [vmem:[#allocation5 + $0x14] sm:$0xf]
    %v62 = vld [vmem:[#allocation5 + $0x18] sm:$0xf]
    %v63 = vld [vmem:[#allocation5 + $0x1c] sm:$0xf]
    %v64 = vld [vmem:[#allocation5 + $0x20] sm:$0xf]
    %v65 = vld [vmem:[#allocation5 + $0x24] sm:$0xf]
    %v66 = vld [vmem:[#allocation5 + $0x28] sm:$0xf]
    %v67 = vld [vmem:[#allocation5 + $0x2c] sm:$0xf]
    %v68 = vld [vmem:[#allocation5 + $0x30] sm:$0xf]
    %v69 = vld [vmem:[#allocation5 + $0x34] sm:$0xf]
    %v70 = vld [vmem:[#allocation5 + $0x38] sm:$0xf]
    %v71 = vld [vmem:[#allocation5 + $0x3c] sm:$0xf]
    %v88 = vunpack.c.l.b16 %v56
    %v89 = vunpack.c.l.b16 %v57
    %v90 = vunpack.c.l.b16 %v58
    %v91 = vunpack.c.l.b16 %v59
    %v92 = vunpack.c.l.b16 %v60
    %v93 = vunpack.c.l.b16 %v61
    %v94 = vunpack.c.l.b16 %v62
    %v95 = vunpack.c.l.b16 %v63
    %v96 = vunpack.c.l.b16 %v64
    %v97 = vunpack.c.l.b16 %v65
    %v98 = vunpack.c.l.b16 %v66
    %v99 = vunpack.c.l.b16 %v67
    %v100 = vunpack.c.l.b16 %v68
    %v101 = vunpack.c.l.b16 %v69
    %v102 = vunpack.c.l.b16 %v70
    %v103 = vunpack.c.l.b16 %v71
    %v104 = vpack.c.b16 %v89, %v88
    %v105 = vpack.c.b16 %v91, %v90
    %v106 = vpack.c.b16 %v93, %v92
    %v107 = vpack.c.b16 %v95, %v94
    %v108 = vpack.c.b16 %v97, %v96
    %v109 = vpack.c.b16 %v99, %v98
    %v110 = vpack.c.b16 %v101, %v100
    %v111 = vpack.c.b16 %v103, %v102
    %120 = vmatprep.subr.bf16.mxu0 0
    %121 = vmatpush1.bf16.xpose.msra.mxu0 %v111
    %122 = vmatprep.subr.bf16.mxu0 0
    %123 = vmatpush1.bf16.xpose.msra.mxu0 %v110
    %124 = vmatprep.subr.bf16.mxu0 0
    %125 = vmatpush1.bf16.xpose.msra.mxu0 %v109
    %126 = vmatprep.subr.bf16.mxu0 0
    %127 = vmatpush1.bf16.xpose.msra.mxu0 %v108
    %128 = vmatprep.subr.bf16.mxu0 0
    %129 = vmatpush1.bf16.xpose.msra.mxu0 %v107
    %130 = vmatprep.subr.bf16.mxu0 0
    %131 = vmatpush1.bf16.xpose.msra.mxu0 %v106
    %132 = vmatprep.subr.bf16.mxu0 0
    %133 = vmatpush1.bf16.xpose.msra.mxu0 %v105
    %134 = vmatprep.subr.bf16.mxu0 0
    %135 = vmatpush1.bf16.xpose.msra.mxu0 %v104
    %136 = vmatprep.subr.bf16.mxu0 0
    %137 = vmatpush2.bf16.xpose.msra.mxu0 0
    %138 = vmatprep.subr.bf16.mxu0 0
    %139 = vmatpush2.bf16.xpose.msra.mxu0 0
    %140 = vmatprep.subr.bf16.mxu0 0
    %141 = vmatpush2.bf16.xpose.msra.mxu0 0
    %142 = vmatprep.subr.bf16.mxu0 0
    %143 = vmatpush2.bf16.xpose.msra.mxu0 0
    %144 = vmatprep.subr.bf16.mxu0 0
    %145 = vmatpush2.bf16.xpose.msra.mxu0 0
    %146 = vmatprep.subr.bf16.mxu0 0
    %147 = vmatpush2.bf16.xpose.msra.mxu0 0
    %148 = vmatprep.subr.bf16.mxu0 0
    %149 = vmatpush2.bf16.xpose.msra.mxu0 0
    %150 = vmatprep.subr.bf16.mxu0 0
    %151 = vmatpush2.bf16.xpose.msra.mxu0 0
    %152 = vmatprep.mubr.bf16.mxu0 0
    %153 = vmatmul.mubr.bf16.gmra.mxu0 %v55
    %v154 = vpop.f32.mrf.mxu0
    %v155 = vadd.f32 0.0, %v154
    %v156 = vpop.f32.mrf.mxu0
    %v157 = vpop.f32.mrf.mxu0
    %v158 = vpop.f32.mrf.mxu0
    %159 = vdwg.mxu0
    %s160 = sadd.s32 0, 0
    %s161 = smul.u32 %s160, 128
    %s162 = sshra.s32 %s161, 7
    %s163 = sand.u32 %s161, 127
    %s164 = scalar_lea.vmem %s2, %s162
    %v165 = vld [vmem:[%s164] sm:$0x1]
    %v166 = vld [vmem:[#allocation7] sm:$0x1]
    %v167 = vmul.f32 %v155, %v165
    %vm168 = vcmask 1040384
    %v169 = vsel %vm168, %v167, 0.0
    %170 = vadd.xlane.f32.xlu0 %v169
    %v171 = vpop.xlane.xlu0 %170
    %v172 = vadd.f32 %v166, %v171
    %vm173 = vcmask 0
    %174 = vst.msk [vmem:[#allocation7] sm:$0x1] %vm173, %v172
    // Predicated region
    $region26: #{tpu_custom_call.1} parent=1 // pred_check
      _
    $region27: #{tpu_custom_call.1} parent=1 // pred_check_branch
      %176 = sbr.rel (0) target = $region29
    $region28: #{tpu_custom_call.1} parent=1 // pred_region
      %s178 = ssub.s32 16, 16
      %179 = vsyncadd [#allocation4], %s178
      %s181 = sshll.u32 [#allocation7], 4
      %s182 = int_to_ptr.vmem [resolvable:$true] %s181
      %184 = dma.vmem_to_hbm [thread:$0]  %s182, 16, %s3, [#allocation4]
    $region29: #{tpu_custom_call.1} parent=1 // pred_fallthru
      _
    // Predicated region
    $region30: #{tpu_custom_call.1} parent=1 // pred_check
      _
    $region31: #{tpu_custom_call.1} parent=1 // pred_check_branch
      %186 = sbr.rel (0) target = $region33
    $region32: #{tpu_custom_call.1} parent=1 // pred_region
      %187 = dma.done [#allocation4], 16
    $region33: #{tpu_custom_call.1} parent=1 // pred_fallthru
      _
    %188 = vsyncpa [#allocation3], 1
    %189 = vsyncpa [#allocation6], 1
    %190 = vsyncpa [#allocation4], 1

</llo_original>
